<compile_context>
chip_gen: v5e
topology: v5e:2x2
jax: 0.10.0
libtpu: 0.0.40
codegen_flags: <defaults>
</compile_context>

<pallas_src>
import functools

import jax
import jax.numpy as jnp
from jax.experimental import pallas as pl
from jax.experimental.pallas import tpu as pltpu

D = 128 * 2  # fixed by the module: self.atten has 256 elements


def _attention_kernel(x_ref, atten_ref, o_ref, m_sc, l_sc, acc_sc, *, tsub):
    # x_ref:     (BB, Tc, D)  block of batch rows x T-chunk
    # atten_ref: (1, D)       attention vector (broadcast across batch)
    # o_ref:     (BB, D)      output rows for this batch block (written on last T step)
    # m_sc/l_sc: (BB, 1)      online-softmax running max / denominator
    # acc_sc:    (BB, D)      running exp-weighted sum of x
    t = pl.program_id(1)

    @pl.when(t == 0)
    def _():
        m_sc[...] = jnp.full_like(m_sc, -jnp.inf)
        l_sc[...] = jnp.zeros_like(l_sc)
        acc_sc[...] = jnp.zeros_like(acc_sc)

    bb = x_ref.shape[0]
    tc = x_ref.shape[1]
    n_sub = tc // tsub  # static

    # Hoist the atten load and its broadcast out of the sub-chunk loop.
    a = atten_ref[...]                                            # (1, D)
    a_b = jnp.broadcast_to(a[:, None, :], (bb, tsub, D))          # (BB, tsub, D)

    def body(i, carry):
        start = pl.multiple_of(i * tsub, tsub)
        xs = x_ref[:, pl.ds(start, tsub), :]                      # (BB, tsub, D)

        # scores = tanh(x) @ atten, done as VPU multiply + lane reduce.
        s = jnp.sum(jnp.tanh(xs) * a_b, axis=-1)                  # (BB, tsub)

        # online softmax update
        m_prev = m_sc[...]                                        # (BB, 1)
        m_new = jnp.maximum(m_prev, jnp.max(s, axis=-1, keepdims=True))
        corr = jnp.exp(m_prev - m_new)                            # (BB, 1)
        e = jnp.exp(s - m_new)                                    # (BB, tsub)
        l_sc[...] = corr * l_sc[...] + jnp.sum(e, axis=-1, keepdims=True)
        acc_sc[...] = corr * acc_sc[...] + jnp.sum(xs * e[:, :, None], axis=1)
        m_sc[...] = m_new
        return carry

    jax.lax.fori_loop(0, n_sub, body, 0, unroll=True)

    @pl.when(t == pl.num_programs(1) - 1)
    def _():
        # Exact division: denominator is only (BB, 1) values, negligible cost.
        out = acc_sc[...] / l_sc[...]                             # (BB, D)
        o_ref[...] = jnp.maximum(out, 0.0).astype(o_ref.dtype)


def _choose_tiles(B, T):
    """Pick (block_b, block_t, tsub).

    Constraints:
      * out block (block_b, D): block_b multiple of 8 OR block_b == B; divides B.
      * x  block (block_b, block_t, D): block_t multiple of 8 OR == T; divides T.
      * tsub divides block_t; tsub multiple of 8 OR == block_t.
    Sizing (HBM-bound kernel):
      * x block ~1-4 MiB (double-buffered <= 8 MiB: safe on v5e/v6e/v7x defaults).
      * tsub keeps live sub-chunk intermediates ~<=256 KiB (no big VMEM spills).
    """
    # ---- batch block ----
    bb = 0
    c = min(B, 64) // 8 * 8
    while c >= 8:
        if B % c == 0:
            bb = c
            break
        c -= 8
    if bb == 0:
        bb = B  # full batch axis is always a legal block dim

    # Prefer an even number of batch blocks (v7x: 2 TensorCores share the
    # "parallel" batch axis; an odd count leaves one TC with extra work).
    if B % bb == 0 and (B // bb) % 2 == 1 and bb % 16 == 0:
        bb //= 2

    if T % 8 != 0:
        return bb, T, T  # small / odd T: single chunk over the full T axis

    # ---- inner sub-chunk over T (~256 KiB of x live per iteration) ----
    tsub = max(8, (256 * 1024 // (bb * D * 4)) // 8 * 8)
    tsub = min(tsub, T)
    while T % tsub != 0:
        tsub -= 8

    # ---- grid-level T block: a few sub-chunks, <= ~4 MiB per DMA block ----
    n_sub = 8
    while n_sub > 1 and (
        (T // tsub) % n_sub != 0 or bb * tsub * n_sub * D * 4 > 4 * 1024 * 1024
    ):
        n_sub -= 1
    return bb, tsub * n_sub, tsub


def attention_forward(x, atten):
    """x: (B, T, D) float32, atten: (D,) float32 -> (B, D) float32."""
    B, T, d = x.shape
    assert d == D, f"last dim must be {D}"
    atten2d = atten.reshape(1, D)

    block_b, block_t, tsub = _choose_tiles(B, T)
    n_b = B // block_b
    n_t = T // block_t

    kernel = functools.partial(_attention_kernel, tsub=tsub)

    return pl.pallas_call(
        kernel,
        out_shape=jax.ShapeDtypeStruct((B, D), x.dtype),
        grid_spec=pltpu.PrefetchScalarGridSpec(
            num_scalar_prefetch=0,
            grid=(n_b, n_t),
            in_specs=[
                pl.BlockSpec((block_b, block_t, D), lambda b, t: (b, t, 0)),
                pl.BlockSpec((1, D), lambda b, t: (0, 0)),
            ],
            out_specs=pl.BlockSpec((block_b, D), lambda b, t: (b, 0)),
            scratch_shapes=[
                pltpu.VMEM((block_b, 1), jnp.float32),   # running max
                pltpu.VMEM((block_b, 1), jnp.float32),   # running denom
                pltpu.VMEM((block_b, D), jnp.float32),   # running weighted sum
            ],
        ),
        compiler_params=pltpu.CompilerParams(
            dimension_semantics=("parallel", "arbitrary"),
            # Headroom on every generation (v5e/v6e: 128 MiB physical,
            # v7x: 64 MiB physical, 32 MiB is its default scoped limit).
            vmem_limit_bytes=32 * 1024 * 1024,
        ),
    )(x, atten2d)


def attention_reference(x, atten):
    """Pure-JAX reference matching the PyTorch forward exactly."""
    m = jnp.tanh(x)
    scores = jnp.einsum("btd,d->bt", m, atten)
    alpha = jax.nn.softmax(scores, axis=1)[..., None]
    out = jnp.sum(x * alpha, axis=1)
    return jax.nn.relu(out)


if __name__ == "__main__":
    key = jax.random.PRNGKey(0)
    k_x, k_a = jax.random.split(key)

    B, T = 2, 8
    x = jax.random.normal(k_x, (B, T, D), dtype=jnp.float32)
    # torch.nn.init.normal_ -> standard normal init of the attention vector
    atten = jax.random.normal(k_a, (D,), dtype=jnp.float32)

    out = attention_forward(x, atten)
    out = jax.block_until_ready(out)

    ref = attention_reference(x, atten)
    assert out.shape == (B, D)
    # Exact softmax normalization (no approx reciprocal) -> tight tolerance.
    assert jnp.allclose(out, ref, atol=1e-4, rtol=1e-4), "mismatch vs reference"

    print("KERNEL_OK")
</pallas_src>

<mosaic_0001>
module attributes {stable_mosaic.version = 11 : i64} {
  func.func @_attention_kernel(%arg0: i32, %arg1: i32, %arg2: memref<2x8x256xf32, #tpu.memory_space<vmem>>, %arg3: memref<1x256xf32, #tpu.memory_space<vmem>>, %arg4: memref<2x256xf32, #tpu.memory_space<vmem>>, %arg5: memref<2x1xf32, #tpu.memory_space<vmem>>, %arg6: memref<2x1xf32, #tpu.memory_space<vmem>>, %arg7: memref<2x256xf32, #tpu.memory_space<vmem>>) attributes {dimension_semantics = [#tpu.dimension_semantics<parallel>, #tpu.dimension_semantics<arbitrary>], iteration_bounds = array<i64: 1, 1>, scalar_prefetch = 0 : i64, scratch_operands = 3 : i64, tpu.core_type = #tpu.core_type<tc>, window_params = [{transform_indices = @transform_0, window_bounds = array<i64: 2, 8, 256>}, {pipeline_mode = #tpu.pipeline_mode<synchronous>, transform_indices = @transform_1, window_bounds = array<i64: 1, 256>}, {transform_indices = @transform_2, window_bounds = array<i64: 2, 256>}]} {
    %c0_i32 = arith.constant 0 : i32
    %0 = arith.cmpi eq, %arg1, %c0_i32 : i32
    %1 = arith.extui %0 : i1 to i32
    %c0_i32_0 = arith.constant 0 : i32
    %2 = arith.cmpi ne, %1, %c0_i32_0 : i32
    scf.if %2 {
      %cst_22 = arith.constant 0xFF800000 : f32
      %42 = vector.broadcast %cst_22 : f32 to vector<2x1xf32>
      %c0_23 = arith.constant 0 : index
      %c0_24 = arith.constant 0 : index
      %43 = vector.load %arg5[%c0_23, %c0_24] : memref<2x1xf32, #tpu.memory_space<vmem>>, vector<2x1xf32>
      tpu.vector_store %arg5[%c0_23, %c0_24], %42 {strides = array<i32>} : memref<2x1xf32, #tpu.memory_space<vmem>>, vector<2x1xf32>,
      %cst_25 = arith.constant 0.000000e+00 : f32
      %44 = vector.broadcast %cst_25 : f32 to vector<2x1xf32>
      %c0_26 = arith.constant 0 : index
      %c0_27 = arith.constant 0 : index
      %45 = vector.load %arg6[%c0_26, %c0_27] : memref<2x1xf32, #tpu.memory_space<vmem>>, vector<2x1xf32>
      tpu.vector_store %arg6[%c0_26, %c0_27], %44 {strides = array<i32>} : memref<2x1xf32, #tpu.memory_space<vmem>>, vector<2x1xf32>,
      %cst_28 = arith.constant 0.000000e+00 : f32
      %46 = vector.broadcast %cst_28 : f32 to vector<2x256xf32>
      %c0_29 = arith.constant 0 : index
      %c0_30 = arith.constant 0 : index
      %47 = vector.load %arg7[%c0_29, %c0_30] : memref<2x256xf32, #tpu.memory_space<vmem>>, vector<2x256xf32>
      tpu.vector_store %arg7[%c0_29, %c0_30], %46 {strides = array<i32>} : memref<2x256xf32, #tpu.memory_space<vmem>>, vector<2x256xf32>,
    } else {
    }
    %c0 = arith.constant 0 : index
    %c0_1 = arith.constant 0 : index
    %3 = vector.load %arg3[%c0, %c0_1] : memref<1x256xf32, #tpu.memory_space<vmem>>, vector<1x256xf32>
    %4 = vector.shape_cast %3 : vector<1x256xf32> to vector<1x1x256xf32>
    %5 = vector.shape_cast %4 : vector<1x1x256xf32> to vector<1x1x256xf32>
    %6 = vector.broadcast %5 : vector<1x1x256xf32> to vector<2x8x256xf32>
    %c0_i32_2 = arith.constant 0 : i32
    %c8_i32 = arith.constant 8 : i32
    %7 = arith.muli %c0_i32_2, %c8_i32 : i32
    %8 = tpu.assume_multiple %7, 8 : i32
    %c0_3 = arith.constant 0 : index
    %9 = arith.index_cast %8 : i32 to index
    %c0_4 = arith.constant 0 : index
    %10 = vector.load %arg2[%c0_3, %9, %c0_4] : memref<2x8x256xf32, #tpu.memory_space<vmem>>, vector<2x8x256xf32>
    %11 = math.tanh %10 : vector<2x8x256xf32>
    %12 = arith.mulf %11, %6 : vector<2x8x256xf32>
    %cst = arith.constant dense<0.000000e+00> : vector<2x8xf32>
    %13 = vector.multi_reduction <add>, %12, %cst [2] : vector<2x8x256xf32> to vector<2x8xf32>
    %c0_5 = arith.constant 0 : index
    %c0_6 = arith.constant 0 : index
    %14 = vector.load %arg5[%c0_5, %c0_6] : memref<2x1xf32, #tpu.memory_space<vmem>>, vector<2x1xf32>
    %cst_7 = arith.constant dense<0xFF800000> : vector<2xf32>
    %15 = vector.multi_reduction <maximumf>, %13, %cst_7 [1] : vector<2x8xf32> to vector<2xf32>
    %16 = vector.shape_cast %15 : vector<2xf32> to vector<2x1xf32>
    %17 = arith.maximumf %14, %16 : vector<2x1xf32>
    %18 = arith.subf %14, %17 : vector<2x1xf32>
    %19 = math.exp %18 : vector<2x1xf32>
    %20 = vector.broadcast %17 : vector<2x1xf32> to vector<2x8xf32>
    %21 = arith.subf %13, %20 : vector<2x8xf32>
    %22 = math.exp %21 : vector<2x8xf32>
    %c0_8 = arith.constant 0 : index
    %c0_9 = arith.constant 0 : index
    %23 = vector.load %arg6[%c0_8, %c0_9] : memref<2x1xf32, #tpu.memory_space<vmem>>, vector<2x1xf32>
    %24 = arith.mulf %19, %23 : vector<2x1xf32>
    %cst_10 = arith.constant dense<0.000000e+00> : vector<2xf32>
    %25 = vector.multi_reduction <add>, %22, %cst_10 [1] : vector<2x8xf32> to vector<2xf32>
    %26 = vector.shape_cast %25 : vector<2xf32> to vector<2x1xf32>
    %27 = arith.addf %24, %26 : vector<2x1xf32>
    %c0_11 = arith.constant 0 : index
    %c0_12 = arith.constant 0 : index
    %28 = vector.load %arg6[%c0_11, %c0_12] : memref<2x1xf32, #tpu.memory_space<vmem>>, vector<2x1xf32>
    tpu.vector_store %arg6[%c0_11, %c0_12], %27 {strides = array<i32>} : memref<2x1xf32, #tpu.memory_space<vmem>>, vector<2x1xf32>,
    %c0_13 = arith.constant 0 : index
    %c0_14 = arith.constant 0 : index
    %29 = vector.load %arg7[%c0_13, %c0_14] : memref<2x256xf32, #tpu.memory_space<vmem>>, vector<2x256xf32>
    %30 = vector.broadcast %19 : vector<2x1xf32> to vector<2x256xf32>
    %31 = arith.mulf %30, %29 : vector<2x256xf32>
    %32 = vector.shape_cast %22 : vector<2x8xf32> to vector<2x8x1xf32>
    %33 = vector.broadcast %32 : vector<2x8x1xf32> to vector<2x8x256xf32>
    %34 = arith.mulf %10, %33 : vector<2x8x256xf32>
    %cst_15 = arith.constant dense<0.000000e+00> : vector<2x256xf32>
    %35 = vector.multi_reduction <add>, %34, %cst_15 [1] : vector<2x8x256xf32> to vector<2x256xf32>
    %36 = arith.addf %31, %35 : vector<2x256xf32>
    %c0_16 = arith.constant 0 : index
    %c0_17 = arith.constant 0 : index
    %37 = vector.load %arg7[%c0_16, %c0_17] : memref<2x256xf32, #tpu.memory_space<vmem>>, vector<2x256xf32>
    tpu.vector_store %arg7[%c0_16, %c0_17], %36 {strides = array<i32>} : memref<2x256xf32, #tpu.memory_space<vmem>>, vector<2x256xf32>,
    %c0_18 = arith.constant 0 : index
    %c0_19 = arith.constant 0 : index
    %38 = vector.load %arg5[%c0_18, %c0_19] : memref<2x1xf32, #tpu.memory_space<vmem>>, vector<2x1xf32>
    tpu.vector_store %arg5[%c0_18, %c0_19], %17 {strides = array<i32>} : memref<2x1xf32, #tpu.memory_space<vmem>>, vector<2x1xf32>,
    %c1_i32 = arith.constant 1 : i32
    %c0_i32_20 = arith.constant 0 : i32
    %39 = arith.cmpi eq, %arg1, %c0_i32_20 : i32
    %40 = arith.extui %39 : i1 to i32
    %c0_i32_21 = arith.constant 0 : i32
    %41 = arith.cmpi ne, %40, %c0_i32_21 : i32
    scf.if %41 {
      %c0_22 = arith.constant 0 : index
      %c0_23 = arith.constant 0 : index
      %42 = vector.load %arg7[%c0_22, %c0_23] : memref<2x256xf32, #tpu.memory_space<vmem>>, vector<2x256xf32>
      %c0_24 = arith.constant 0 : index
      %c0_25 = arith.constant 0 : index
      %43 = vector.load %arg6[%c0_24, %c0_25] : memref<2x1xf32, #tpu.memory_space<vmem>>, vector<2x1xf32>
      %44 = vector.broadcast %43 : vector<2x1xf32> to vector<2x256xf32>
      %45 = arith.divf %42, %44 : vector<2x256xf32>
      %cst_26 = arith.constant 0.000000e+00 : f32
      %46 = vector.broadcast %cst_26 : f32 to vector<2x256xf32>
      %47 = arith.maximumf %45, %46 : vector<2x256xf32>
      %c0_27 = arith.constant 0 : index
      %c0_28 = arith.constant 0 : index
      %48 = vector.load %arg4[%c0_27, %c0_28] : memref<2x256xf32, #tpu.memory_space<vmem>>, vector<2x256xf32>
      tpu.vector_store %arg4[%c0_27, %c0_28], %47 {strides = array<i32>} : memref<2x256xf32, #tpu.memory_space<vmem>>, vector<2x256xf32>,
    } else {
    }
    return
  }
  func.func @transform_0(%arg0: i32, %arg1: i32) -> (i32, i32, i32) {
    %c0_i32 = arith.constant 0 : i32
    %c0_i32_0 = arith.constant 0 : i32
    return %arg0, %arg1, %c0_i32 : i32, i32, i32
  }
  func.func @transform_1(%arg0: i32, %arg1: i32) -> (i32, i32) {
    %c0_i32 = arith.constant 0 : i32
    %c0_i32_0 = arith.constant 0 : i32
    %c0_i32_1 = arith.constant 0 : i32
    return %c0_i32, %c0_i32_0 : i32, i32
  }
  func.func @transform_2(%arg0: i32, %arg1: i32) -> (i32, i32) {
    %c0_i32 = arith.constant 0 : i32
    %c0_i32_0 = arith.constant 0 : i32
    return %arg0, %c0_i32 : i32, i32
  }
}

</mosaic_0001>

<llo_original>
// kernel: tpu_custom_call.1
$region0: #{tpu_custom_call.1}
  #allocation0 [shape = 'u32[]', space=smem, size = 0x4, offset = 0x4, fixed_abs, tag = 'smem constant byte address 0x4 - core index']
  #allocation1 [shape = 'u32[72,128]{1,0:T(1,128)}', space=vmem, size = 0x9000, scoped, tag = 'internal scratch']
  #allocation2 [shape = 'f32[2,1]{1,0:T(2,128)}', space=vmem, size = 0x400, scoped, tag = 'scratch operand']
  #allocation3 [shape = 'f32[2,1]{1,0:T(2,128)}', space=vmem, size = 0x400, scoped, tag = 'scratch operand']
  #allocation4 [shape = 'f32[2,256]{1,0:T(2,128)}', space=vmem, size = 0x800, scoped, tag = 'scratch operand']
  %s0 = inlined_call_operand.hbm [shape: f32[2,8,256], index: 0, kind: input, shape index: {}]
  %s1 = inlined_call_operand.hbm [shape: f32[1,256], index: 1, kind: input, shape index: {}]
  %s2 = inlined_call_operand.hbm [shape: f32[2,256], index: 2, kind: output, shape index: {}]
  %s3 = sld [smem:[#allocation0]]
  $region34: #{tpu_custom_call.1} parent=0
    _
  %s5 = ssub.s32 1, %s3
  %s6 = scalar_select 0, %s5, %s3
  $region1: #{tpu_custom_call.1} parent=0
    #allocation5 [shape = 'u8[16384]{0}', space=vmem, size = 0x4000, scoped, tag = 'input window, operand 0, single buffered']
    #allocation6 [shape = 's32[1]{0}', space=sflag, size = 0x4, scoped, tag = 'scoped memory for tpu_custom_call.1']
    #allocation7 [shape = 's32[1]{0}', space=sflag, size = 0x4, scoped, tag = 'scoped memory for tpu_custom_call.1']
    #allocation8 [shape = 'u8[1024]{0}', space=vmem, size = 0x400, scoped, tag = 'input window, operand 1, single buffered']
    #allocation9 [shape = 's32[1]{0}', space=sflag, size = 0x4, scoped, tag = 'scoped memory for tpu_custom_call.1']
    #allocation10 [shape = 'u8[2048]{0}', space=vmem, size = 0x800, scoped, tag = 'output window, operand 0, single buffered']
    %7 = vsyncpa [#allocation6], 0
    %8 = vsyncpa [#allocation9], 0
    %9 = vsyncpa [#allocation7], 0
    // Predicated region
    $region2: #{tpu_custom_call.1} parent=1 // pred_check
      _
    $region3: #{tpu_custom_call.1} parent=1 // pred_check_branch
      %11 = sbr.rel (0) target = $region5
    $region4: #{tpu_custom_call.1} parent=1 // pred_region
      %13 = vsyncadd [#allocation6], 0
      %s14 = sshll.u32 %s0, 4
      %s15 = int_to_ptr.hbm [resolvable:$true] %s14
      %s16 = sshll.u32 [#allocation5], 4
      %s17 = int_to_ptr.vmem [resolvable:$true] %s16
      %22 = dma.hbm_to_vmem [thread:$0]  %s15, 512, %s17, [#allocation6], 256, 256, 16
    $region5: #{tpu_custom_call.1} parent=1 // pred_fallthru
      _
    // Predicated region
    $region6: #{tpu_custom_call.1} parent=1 // pred_check
      _
    $region7: #{tpu_custom_call.1} parent=1 // pred_check_branch
      %24 = sbr.rel (0) target = $region9
    $region8: #{tpu_custom_call.1} parent=1 // pred_region
      %26 = vsyncadd [#allocation9], 0
      %s28 = sshll.u32 %s1, 4
      %s29 = int_to_ptr.hbm [resolvable:$true] %s28
      %s30 = sshll.u32 [#allocation8], 4
      %s31 = int_to_ptr.vmem [resolvable:$true] %s30
      %33 = dma.hbm_to_vmem [thread:$0]  %s29, 32, %s31, [#allocation9]
    $region9: #{tpu_custom_call.1} parent=1 // pred_fallthru
      _
    // Predicated region
    $region10: #{tpu_custom_call.1} parent=1 // pred_check
      _
    $region11: #{tpu_custom_call.1} parent=1 // pred_check_branch
      %35 = sbr.rel (0) target = $region13
    $region12: #{tpu_custom_call.1} parent=1 // pred_region
      %37 = dma.done [#allocation6], 512
    $region13: #{tpu_custom_call.1} parent=1 // pred_fallthru
      _
    // Predicated region
    $region14: #{tpu_custom_call.1} parent=1 // pred_check
      _
    $region15: #{tpu_custom_call.1} parent=1 // pred_check_branch
      %39 = sbr.rel (0) target = $region17
    $region16: #{tpu_custom_call.1} parent=1 // pred_region
      %41 = dma.done [#allocation9], 32
    $region17: #{tpu_custom_call.1} parent=1 // pred_fallthru
      _
    %p42 = scmp.eq.s32.totalorder 0, 0
    // Predicated region
    $region18: #{tpu_custom_call.1} parent=1 // pred_check
      %p43 = pneg %p42
    $region19: #{tpu_custom_call.1} parent=1 // pred_check_branch
      %45 = sbr.rel (%p43) target = $region21
    $region20: #{tpu_custom_call.1} parent=1 // pred_region
      %vm46 = vcmask 1024
      %47 = vst.msk [vmem:[#allocation2] sm:$0x3] %vm46, -inf
      %48 = vst.msk [vmem:[#allocation3] sm:$0x3] %vm46, 0.0
      %49 = vst [vmem:[#allocation4] sm:$0xf] 0.0
    $region21: #{tpu_custom_call.1} parent=1 // pred_fallthru
      _
    %v50 = vld [vmem:[#allocation8] sm:$0x3]
    %v52 = vperm.slane %v50, 0
    %v53 = vperm.slane %v50, 1
    %s56 = smul.u32 0, 2
    %s57 = smul.addr %s56, 8
    %s58 = scalar_lea.vmem [#allocation5], %s57
    %v59 = vld [vmem:[%s58] sm:$0xff]
    %v60 = vld [vmem:[%s58 + $0x8] sm:$0xff]
    %v61 = vld [vmem:[%s58 + $0x10] sm:$0xff]
    %v62 = vld [vmem:[%s58 + $0x18] sm:$0xff]
    %v63 = vtanh.pop %v59
    %v64 = vtanh.pop %v60
    %v65 = vtanh.pop %v61
    %v66 = vtanh.pop %v62
    %v67 = vmul.f32 %v63, %v52
    %v68 = vmul.f32 %v64, %v53
    %v69 = vmul.f32 %v65, %v52
    %v70 = vmul.f32 %v66, %v53
    %v71 = vadd.f32 %v67, %v68
    %72 = vadd.xlane.f32.xlu0 %v71
    %v73 = vpop.xlane.xlu0 %72
    %v74 = vadd.f32 %v69, %v70
    %75 = vadd.xlane.f32.xlu0 %v74
    %v76 = vpop.xlane.xlu0 %75
    %v77 = vld [vmem:[#allocation2] sm:$0x3]
    %v80 = vlaneseq
    %v81 = vand.u32 %v80, 127
    %v82 = vperm.slane %v73, %v81
    %v83 = vperm.slane %v76, %v81
    %vm84 = vcmask 1041409
    %v85 = vsel %vm84, %v83, %v82
    %vm87 = vcmask 58368
    %v88 = vsel %vm87, %v85, -inf
    %89 = vmax.xlane.f32.xlu0 %v88
    %v90 = vpop.xlane.xlu0 %89
    %v91 = vmax.f32 %v77, %v90
    %v92 = vsub.f32 %v77, %v91
    %v93 = vmul.f32 %v92, 1.442695
    %v94 = vpow.pop %v93
    %96 = vset.pattern.permute.xlu0 0
    %97 = vperm.xlu0 %96, %v91
    %v98 = vpop.permute.xlu0 %97
    %v99 = vperm.slane %v98, 0
    %v100 = vperm.slane %v98, 1
    %v103 = vsub.f32 %v73, %v99
    %v104 = vsub.f32 %v76, %v100
    %v105 = vmul.f32 %v103, 1.442695
    %v106 = vpow.pop %v105
    %v107 = vmul.f32 %v104, 1.442695
    %v108 = vpow.pop %v107
    %v109 = vld [vmem:[#allocation3] sm:$0x3]
    %v110 = vmul.f32 %v94, %v109
    %113 = vset.pattern.permute.xlu0 0
    %114 = vperm.xlu0 %113, %v106
    %v115 = vpop.permute.xlu0 %114
    %116 = vset.pattern.permute.xlu0 0
    %117 = vperm.xlu0 %116, %v108
    %v118 = vpop.permute.xlu0 %117
    %v119 = vperm.slane %v115, %v81
    %v120 = vperm.slane %v118, %v81
    %v121 = vsel %vm84, %v120, %v119
    %v123 = vsel %vm87, %v121, 0.0
    %124 = vadd.xlane.f32.xlu0 %v123
    %v125 = vpop.xlane.xlu0 %124
    %v126 = vadd.f32 %v110, %v125
    %vm127 = vcmask 1024
    %128 = vst.msk [vmem:[#allocation3] sm:$0x3] %vm127, %v126
    %v129 = vld [vmem:[#allocation4] sm:$0xf]
    %131 = vset.pattern.permute.xlu0 0
    %132 = vperm.xlu0 %131, %v94
    %v133 = vpop.permute.xlu0 %132
    %136 = vst [vmem:[#allocation1] ss:$4 sm:$0xff] %v129
    %v137 = vld.sshfl [vmem:[#allocation1] sm:$0xff pattern:$0x73625140]
    %v138 = vld.sshfl [vmem:[#allocation1 + $0x8] sm:$0xff pattern:$0x73625140]
    %v141 = vmul.f32 %v133, %v137
    %v142 = vmul.f32 %v133, %v138
    %v145 = vmul.f32 %v59, %v115
    %v146 = vmul.f32 %v60, %v115
    %v147 = vmul.f32 %v61, %v118
    %v148 = vmul.f32 %v62, %v118
    %v149 = vrot.slane %v145, 4
    %v150 = vadd.f32 %v145, %v149
    %v151 = vrot.slane %v150, 2
    %v152 = vadd.f32 %v150, %v151
    %v153 = vrot.slane %v152, 1
    %v154 = vadd.f32 %v152, %v153
    %v155 = vrot.slane %v146, 4
    %v156 = vadd.f32 %v146, %v155
    %v157 = vrot.slane %v156, 2
    %v158 = vadd.f32 %v156, %v157
    %v159 = vrot.slane %v158, 1
    %v160 = vadd.f32 %v158, %v159
    %v161 = vrot.slane %v147, 4
    %v162 = vadd.f32 %v147, %v161
    %v163 = vrot.slane %v162, 2
    %v164 = vadd.f32 %v162, %v163
    %v165 = vrot.slane %v164, 1
    %v166 = vadd.f32 %v164, %v165
    %v167 = vrot.slane %v148, 4
    %v168 = vadd.f32 %v148, %v167
    %v169 = vrot.slane %v168, 2
    %v170 = vadd.f32 %v168, %v169
    %v171 = vrot.slane %v170, 1
    %v172 = vadd.f32 %v170, %v171
    %v177 = vsel %vm84, %v166, %v154
    %v178 = vsel %vm84, %v172, %v160
    %v181 = vadd.f32 %v141, %v177
    %v182 = vadd.f32 %v142, %v178
    %v185 = vrot.slane %v182, 6
    %vm186 = vcmask 1041408
    %v187 = vsel %vm186, %v181, %v185
    %189 = vst [vmem:[#allocation4] sm:$0xf] %v187
    %190 = vst.msk [vmem:[#allocation2] sm:$0x3] %vm127, %v91
    // Predicated region
    $region22: #{tpu_custom_call.1} parent=1 // pred_check
      %p191 = pneg %p42
    $region23: #{tpu_custom_call.1} parent=1 // pred_check_branch
      %193 = sbr.rel (%p191) target = $region25
    $region24: #{tpu_custom_call.1} parent=1 // pred_region
      %v194 = vld [vmem:[#allocation4] sm:$0xf]
      %v195 = vld [vmem:[#allocation3] sm:$0x3]
      %197 = vset.pattern.permute.xlu0 0
      %198 = vperm.xlu0 %197, %v195
      %v199 = vpop.permute.xlu0 %198
      %v201 = vunpack.c.l.s4 269488144
      %v202 = vunpack.c.0.s8 %v201
      %v203 = vperm.slane %v199, %v202
      %v205 = vrcp.pop %v203
      %v206 = vmul.f32 %v203, %v205
      %v207 = vsub.f32 1.0, %v206
      %v208 = vmul.f32 %v205, %v207
      %v209 = vadd.f32 %v205, %v208
      %vm210 = vweird.f32 %v203
      %vm211 = vweird.f32 %v205
      %vm212 = vmor %vm210, %vm211
      %v213 = vsel %vm212, %v205, %v209
      %v214 = vand.u32 2147483647, %v203
      %vm215 = vcmp.eq.f32.partialorder %v214, 8.507059e+37
      %v216 = vand.u32 %v203, 2147483648
      %v217 = vor.u32 1.1754944e-38, %v216
      %v218 = vsel %vm215, %v217, %v213
      %v219 = vmul.f32 %v194, %v218
      %v220 = vmax.f32 %v219, 0.0
      %221 = vst [vmem:[#allocation10] sm:$0xf] %v220
    $region25: #{tpu_custom_call.1} parent=1 // pred_fallthru
      _
    // Predicated region
    $region26: #{tpu_custom_call.1} parent=1 // pred_check
      _
    $region27: #{tpu_custom_call.1} parent=1 // pred_check_branch
      %223 = sbr.rel (0) target = $region29
    $region28: #{tpu_custom_call.1} parent=1 // pred_region
      %225 = vsyncadd [#allocation7], 0
      %s227 = sshll.u32 [#allocation10], 4
      %s228 = int_to_ptr.vmem [resolvable:$true] %s227
      %s229 = sshll.u32 %s2, 4
      %s230 = int_to_ptr.hbm [resolvable:$true] %s229
      %232 = dma.vmem_to_hbm [thread:$0]  %s228, 64, %s230, [#allocation7]
    $region29: #{tpu_custom_call.1} parent=1 // pred_fallthru
      _
    // Predicated region
    $region30: #{tpu_custom_call.1} parent=1 // pred_check
      _
    $region31: #{tpu_custom_call.1} parent=1 // pred_check_branch
      %234 = sbr.rel (0) target = $region33
    $region32: #{tpu_custom_call.1} parent=1 // pred_region
      %236 = dma.done [#allocation7], 64
    $region33: #{tpu_custom_call.1} parent=1 // pred_fallthru
      _
    %237 = vsyncpa [#allocation6], 1
    %238 = vsyncpa [#allocation9], 1
    %239 = vsyncpa [#allocation7], 1

</llo_original>
